<compile_context>
chip_gen: v5e
topology: v5e:2x2
jax: 0.10.0
libtpu: 0.0.40
codegen_flags: <defaults>
</compile_context>

<pallas_src>
import functools

import jax
import jax.numpy as jnp
import numpy as np
from jax import lax
from jax.experimental import pallas as pl
from jax.experimental.pallas import tpu as pltpu

NEG = -1.0e30  # finite stand-in for -inf (plain Python float -> literal, never a captured const)


# --------------------------------------------------------------------------
# Kernel 1: vocab/duration reduction  ->  lane-dense (C, tT, U) tables
#   channel 0: blank log-prob (minus lden+sigma)
#   channel 1: label log-prob (minus lden+sigma)
#   channel 2+i: duration-i log-softmax
# --------------------------------------------------------------------------
def _tdt_prep_kernel(labels_ref, acts_ref, out_ref, *, blank, sigma, num_vocab):
    x = acts_ref[...]                                    # (tT, U, V + D)
    la = x[..., :num_vocab].astype(jnp.float32)          # (tT, U, V)
    da = x[..., num_vocab:].astype(jnp.float32)          # (tT, U, D)
    tT, U, V = la.shape
    D = da.shape[-1]

    # log-normalizer over the vocab (never materialize the full log-softmax)
    lmax = jnp.max(la, axis=-1, keepdims=True)
    lden = lmax + jnp.log(jnp.sum(jnp.exp(la - lmax), axis=-1, keepdims=True))   # (tT, U, 1)

    # blank log-prob: static lane slice (no one-hot reduce)
    lb = la[..., blank:blank + 1] - lden - sigma                                  # (tT, U, 1)

    # label log-prob via one masked reduce (padded labels == -1 match nothing;
    # harmless for the cost path — only u = ulen is ever harvested)
    lab = labels_ref[...]                                # (1, U) int32
    onehot = lab[..., None] == lax.broadcasted_iota(jnp.int32, (1, U, V), 2)      # (1, U, V)
    ll = jnp.sum(jnp.where(onehot, la, 0.0), axis=-1, keepdims=True) - lden - sigma

    # duration log-softmax (D is tiny)
    dmax = jnp.max(da, axis=-1, keepdims=True)
    dls = da - (dmax + jnp.log(jnp.sum(jnp.exp(da - dmax), axis=-1, keepdims=True)))  # (tT,U,D)

    out_ref[0] = lb[..., 0]
    out_ref[1] = ll[..., 0]
    for i in range(D):
        out_ref[2 + i] = dls[..., i]


# --------------------------------------------------------------------------
# Kernel 2: wavefront DP over anti-diagonals, batched across B on sublanes
#   comb_ref[c, m] is the (GB, U_pad) slab of table channel c on diagonal m,
#   already skewed:  comb[c, m, b, u] = tables[b, c, m - u, u]  (NEG if invalid)
# --------------------------------------------------------------------------
def _tdt_dp_kernel(tlen_ref, ulen_ref, comb_ref, cost_ref, a_scr, *, durations):
    _, Nrows, GB, U = comb_ref.shape
    d_max = max(durations)

    u_iota = lax.broadcasted_iota(jnp.int32, (GB, U), 1)
    lane0 = u_iota == 0
    tb = tlen_ref[...]                       # (GB, 1)
    ub = ulen_ref[...] + 1                   # (GB, 1)
    nfin = tb + ub - 1                       # (GB, 1) diagonal at which the final LL is read
    lane_last = u_iota == (ub - 1)           # (GB, U)

    # alpha(0, 0) = 0, every other entry on diagonal 0 is impossible
    a_scr[0] = jnp.where(lane0, 0.0, NEG)

    # trace-time plan: back-offset k -> contributing duration indices
    emit_by_off, blank_by_off = {}, {}
    for i, d in enumerate(durations):
        emit_by_off.setdefault(d + 1, []).append(i)      # label emission from (t-d, u-1)
        if d >= 1:
            blank_by_off.setdefault(d, []).append(i)     # blank emission from (t-d, u)
    all_offsets = sorted(set(emit_by_off) | set(blank_by_off))

    def step(n, ll_acc, offsets):
        e_terms, b_terms = [], []
        for k in offsets:
            m = n - k
            arow = a_scr[m]
            for i in emit_by_off.get(k, ()):
                e_terms.append(arow + comb_ref[1, m] + comb_ref[2 + i, m])
            for i in blank_by_off.get(k, ()):
                b_terms.append(arow + comb_ref[0, m] + comb_ref[2 + i, m])

        # --- blank (no-emit) terms: running max, sum of exps, one log ---
        if b_terms:
            m_b = b_terms[0]
            for t in b_terms[1:]:
                m_b = jnp.maximum(m_b, t)
            s_b = jnp.exp(b_terms[0] - m_b)
            for t in b_terms[1:]:
                s_b = s_b + jnp.exp(t - m_b)
        else:  # defensive (only possible in the peeled prologue for exotic duration sets)
            m_b = jnp.full((GB, U), NEG, dtype=jnp.float32)
            s_b = jnp.ones((GB, U), dtype=jnp.float32)
        blank_lse = m_b + jnp.log(s_b)

        # --- harvest the final log-likelihood (fires exactly once per batch lane) ---
        fire = lane_last & (n == nfin)
        ll_acc = jnp.maximum(
            ll_acc, jnp.max(jnp.where(fire, blank_lse, NEG), axis=1, keepdims=True))

        # --- label-emission terms ---
        m_e = e_terms[0]
        for t in e_terms[1:]:
            m_e = jnp.maximum(m_e, t)
        s_e = jnp.exp(e_terms[0] - m_e)
        for t in e_terms[1:]:
            s_e = s_e + jnp.exp(t - m_e)

        # shift emit accumulators from lane u-1 to lane u (XLU roll + hoisted lane-0 mask)
        m_e = jnp.where(lane0, NEG, pltpu.roll(m_e, shift=1, axis=1))
        s_e = jnp.where(lane0, 0.0, pltpu.roll(s_e, shift=1, axis=1))

        m_tot = jnp.maximum(m_e, m_b)
        s_tot = s_e * jnp.exp(m_e - m_tot) + s_b * jnp.exp(m_b - m_tot)
        a_scr[n] = m_tot + jnp.log(s_tot)
        return ll_acc

    ll_acc = jnp.full((GB, 1), NEG, dtype=jnp.float32)

    # statically peeled prologue: n in [1, d_max + 1), m < 0 terms dropped at trace time
    n_steady = min(d_max + 1, Nrows + 1)
    for n in range(1, n_steady):
        offs = [k for k in all_offsets if n - k >= 0]
        ll_acc = step(n, ll_acc, offs)

    # steady state: every offset is valid -> no clamps, no selects
    unroll = max(1, min(8, 512 // U))
    ll_acc = lax.fori_loop(n_steady, Nrows + 1,
                           lambda n, acc: step(n, acc, all_offsets),
                           ll_acc, unroll=unroll)

    cost_ref[...] = -ll_acc


# --------------------------------------------------------------------------
# Wrapper
# --------------------------------------------------------------------------
def _pick_time_tile(T, U, VD, C, in_itemsize, budget_bytes=16 << 20):
    """Largest multiple-of-8 divisor of T whose double-buffered blocks fit the budget."""
    def need(t):
        return 2 * (t * U * VD * in_itemsize + C * t * U * 4)
    cands = [t for t in range(8, T + 1, 8) if T % t == 0]
    if not cands:
        return T
    fitting = [t for t in cands if need(t) <= budget_bytes]
    return max(fitting) if fitting else min(cands)


def tdt_loss(acts, labels, act_lens, label_lens, *, blank, durations,
             sigma=0.0, reduction="mean"):
    """Forward pass of TDTLossNumba (costs only).

    acts:        (B, T, U, V + D) float
    labels:      (B, U - 1) int
    act_lens:    (B,) int   (max == T)
    label_lens:  (B,) int   (max == U - 1)
    """
    durations = tuple(int(d) for d in durations)
    if len(durations) < 2 or durations[0] != 0:
        raise ValueError("durations must start with 0 and contain at least one duration >= 1")

    B, T, U, VD = acts.shape
    D = len(durations)
    V = VD - D
    C = 2 + D
    N = T + U - 1
    U_pad = ((U + 127) // 128) * 128

    # ---- kernel 1: per-batch lane-dense (C, T, U) log-prob tables -------------
    tT = _pick_time_tile(T, U, VD, C, acts.dtype.itemsize)
    prep_need = 2 * (tT * U * VD * acts.dtype.itemsize + C * tT * U * 4) + (1 << 20)
    prep_vmem = int(min(max(prep_need, 16 << 20), 56 << 20))

    labels_p = jnp.pad(labels.astype(jnp.int32), ((0, 0), (0, 1)),
                       constant_values=-1)[:, None, :]    # (B, 1, U)

    prep = functools.partial(_tdt_prep_kernel, blank=int(blank),
                             sigma=float(sigma), num_vocab=V)
    tables = pl.pallas_call(
        prep,
        out_shape=jax.ShapeDtypeStruct((B, C, T, U), jnp.float32),
        grid=(B, T // tT),
        in_specs=[
            pl.BlockSpec((None, 1, U), lambda b, t: (b, 0, 0)),
            pl.BlockSpec((None, tT, U, VD), lambda b, t: (b, t, 0, 0)),
        ],
        out_specs=pl.BlockSpec((None, C, tT, U), lambda b, t: (b, 0, t, 0)),
        compiler_params=pltpu.CompilerParams(
            dimension_semantics=("parallel", "parallel"),
            vmem_limit_bytes=prep_vmem),
    )(labels_p, acts)

    # ---- skew to diagonal coordinates in the wrapper (layout plumbing only) ----
    # comb[c, n, b, u] = tables[b, c, n - u, u]  (NEG if out of range / padded lane)
    rowlen = T + U_pad
    padTU = jnp.pad(tables, ((0, 0), (0, 0), (0, U_pad), (0, U_pad - U)),
                    constant_values=NEG)                   # (B, C, T+U_pad, U_pad)
    y = jnp.swapaxes(padTU, 2, 3)                          # (B, C, U_pad, T+U_pad)
    Np = rowlen - 1
    z = y.reshape(B, C, U_pad * rowlen)[:, :, :U_pad * Np]
    z = z.reshape(B, C, U_pad, Np)[:, :, :, :N]            # (B, C, U_pad, N)
    comb = jnp.transpose(z, (1, 3, 0, 2))                  # (C, N, B, U_pad)

    # ---- pad batch to a multiple of the DP sublane group -----------------------
    GB = 8
    B_pad = ((B + GB - 1) // GB) * GB
    if B_pad != B:
        comb = jnp.pad(comb, ((0, 0), (0, 0), (0, B_pad - B), (0, 0)),
                       constant_values=NEG)
    tlen = jnp.pad(act_lens.astype(jnp.int32), (0, B_pad - B),
                   constant_values=1).reshape(B_pad, 1)
    ulen = jnp.pad(label_lens.astype(jnp.int32), (0, B_pad - B),
                   constant_values=0).reshape(B_pad, 1)

    comb_block = C * N * GB * U_pad * 4
    scr_bytes = (N + 1) * GB * U_pad * 4
    dp_vmem = int(min(max(2 * comb_block + scr_bytes + (1 << 20), 16 << 20), 56 << 20))

    # ---- kernel 2: batched wavefront DP ----------------------------------------
    dp = functools.partial(_tdt_dp_kernel, durations=durations)
    costs = pl.pallas_call(
        dp,
        out_shape=jax.ShapeDtypeStruct((B_pad, 1), jnp.float32),
        grid=(B_pad // GB,),
        in_specs=[
            pl.BlockSpec((GB, 1), lambda g: (g, 0)),
            pl.BlockSpec((GB, 1), lambda g: (g, 0)),
            pl.BlockSpec((C, N, GB, U_pad), lambda g: (0, 0, g, 0)),
        ],
        out_specs=pl.BlockSpec((GB, 1), lambda g: (g, 0)),
        scratch_shapes=[pltpu.VMEM((N + 1, GB, U_pad), jnp.float32)],
        compiler_params=pltpu.CompilerParams(
            dimension_semantics=("parallel",),
            vmem_limit_bytes=dp_vmem),
    )(tlen, ulen, comb)[:B, 0]

    if reduction in ("sum", "mean"):
        costs = jnp.sum(costs, keepdims=True)              # (1,), like torch .sum().unsqueeze_(-1)
        if reduction == "mean":
            costs = costs / B
    return costs


# -------------------------- pure-numpy reference ----------------------------
def _log_softmax_np(x):
    m = x.max(axis=-1, keepdims=True)
    return x - m - np.log(np.exp(x - m).sum(axis=-1, keepdims=True))


def tdt_loss_reference(acts, labels, act_lens, label_lens, blank, durations, sigma):
    acts = np.asarray(acts, dtype=np.float64)
    labels = np.asarray(labels)
    B, T, U, VD = acts.shape
    Dn = len(durations)
    V = VD - Dn
    lsm = _log_softmax_np(acts[..., :V]) - sigma
    dls = _log_softmax_np(acts[..., V:])
    costs = np.zeros((B,), dtype=np.float64)
    for b in range(B):
        Tb, Ub = int(act_lens[b]), int(label_lens[b]) + 1
        alphas = np.full((T, U), -np.inf)
        alphas[0, 0] = 0.0
        for t in range(Tb):
            for u in range(Ub):
                if t == 0 and u == 0:
                    continue
                if u == 0:
                    acc = -np.inf
                    for i in range(1, Dn):
                        d = durations[i]
                        if t >= d:
                            acc = np.logaddexp(acc, alphas[t - d, 0]
                                               + lsm[b, t - d, 0, blank] + dls[b, t - d, 0, i])
                    alphas[t, 0] = acc
                elif t == 0:
                    alphas[0, u] = (alphas[0, u - 1] + lsm[b, 0, u - 1, labels[b, u - 1]]
                                    + dls[b, 0, u - 1, 0])
                else:
                    no_emit = -np.inf
                    for i in range(1, Dn):
                        d = durations[i]
                        if t >= d:
                            no_emit = np.logaddexp(no_emit, alphas[t - d, u]
                                                   + lsm[b, t - d, u, blank] + dls[b, t - d, u, i])
                    emit = -np.inf
                    for i in range(Dn):
                        d = durations[i]
                        if t >= d:
                            emit = np.logaddexp(emit, alphas[t - d, u - 1]
                                                + lsm[b, t - d, u - 1, labels[b, u - 1]]
                                                + dls[b, t - d, u - 1, i])
                    alphas[t, u] = np.logaddexp(emit, no_emit)
        ll = -np.inf
        for i in range(1, Dn):
            d = durations[i]
            if Tb >= d:
                ll = np.logaddexp(ll, alphas[Tb - d, Ub - 1]
                                  + lsm[b, Tb - d, Ub - 1, blank] + dls[b, Tb - d, Ub - 1, i])
        costs[b] = -ll
    return costs


if __name__ == "__main__":
    key = jax.random.PRNGKey(0)
    B, T, U = 2, 8, 5                 # batch, max input length, max label length + 1
    durations = [0, 1, 2, 3]
    D = len(durations)
    V = 6                             # vocab (incl. blank)
    blank = 0
    sigma = 0.05

    k1, k2 = jax.random.split(key)
    acts = jax.random.normal(k1, (B, T, U, V + D), dtype=jnp.float32)
    labels = jax.random.randint(k2, (B, U - 1), 1, V)          # avoid blank id
    act_lens = jnp.array([8, 6], dtype=jnp.int32)              # max == T
    label_lens = jnp.array([4, 3], dtype=jnp.int32)            # max == U - 1

    per_ex = tdt_loss(acts, labels, act_lens, label_lens, blank=blank,
                      durations=durations, sigma=sigma, reduction="none")
    per_ex = jax.block_until_ready(per_ex)

    ref = tdt_loss_reference(np.asarray(acts), np.asarray(labels),
                             np.asarray(act_lens), np.asarray(label_lens),
                             blank, durations, sigma)
    assert np.allclose(np.asarray(per_ex), ref, rtol=2e-3, atol=2e-3), (per_ex, ref)

    mean_cost = tdt_loss(acts, labels, act_lens, label_lens, blank=blank,
                         durations=durations, sigma=sigma, reduction="mean")
    jax.block_until_ready(mean_cost)
    print("KERNEL_OK")
</pallas_src>

<mosaic_0001>
module attributes {stable_mosaic.version = 11 : i64} {
  func.func @_tdt_prep_kernel(%arg0: i32, %arg1: i32, %arg2: memref<1x1x5xi32, #tpu.memory_space<vmem>>, %arg3: memref<1x8x5x10xf32, #tpu.memory_space<vmem>>, %arg4: memref<1x6x8x5xf32, #tpu.memory_space<vmem>>) attributes {dimension_semantics = [#tpu.dimension_semantics<parallel>, #tpu.dimension_semantics<parallel>], iteration_bounds = array<i64: 2, 1>, scalar_prefetch = 0 : i64, scratch_operands = 0 : i64, tpu.core_type = #tpu.core_type<tc>, window_params = [{transform_indices = @transform_0, window_bounds = array<i64: 1, 1, 5>}, {transform_indices = @transform_1, window_bounds = array<i64: 1, 8, 5, 10>}, {transform_indices = @transform_2, window_bounds = array<i64: 1, 6, 8, 5>}]} {
    %c0 = arith.constant 0 : index
    %c0_0 = arith.constant 0 : index
    %c0_1 = arith.constant 0 : index
    %c0_2 = arith.constant 0 : index
    %0 = vector.load %arg3[%c0, %c0_0, %c0_1, %c0_2] : memref<1x8x5x10xf32, #tpu.memory_space<vmem>>, vector<1x8x5x10xf32>
    %1 = vector.shape_cast %0 : vector<1x8x5x10xf32> to vector<8x5x10xf32>
    %2 = vector.extract_strided_slice %1 {offsets = [0, 0, 0], sizes = [8, 5, 6], strides = [1, 1, 1]} : vector<8x5x10xf32> to vector<8x5x6xf32>
    %3 = vector.extract_strided_slice %1 {offsets = [0, 0, 6], sizes = [8, 5, 4], strides = [1, 1, 1]} : vector<8x5x10xf32> to vector<8x5x4xf32>
    %cst = arith.constant dense<0xFF800000> : vector<8x5xf32>
    %4 = vector.multi_reduction <maximumf>, %2, %cst [2] : vector<8x5x6xf32> to vector<8x5xf32>
    %5 = vector.shape_cast %4 : vector<8x5xf32> to vector<8x5x1xf32>
    %6 = vector.broadcast %5 : vector<8x5x1xf32> to vector<8x5x6xf32>
    %7 = arith.subf %2, %6 : vector<8x5x6xf32>
    %8 = math.exp %7 : vector<8x5x6xf32>
    %cst_3 = arith.constant dense<0.000000e+00> : vector<8x5xf32>
    %9 = vector.multi_reduction <add>, %8, %cst_3 [2] : vector<8x5x6xf32> to vector<8x5xf32>
    %10 = vector.shape_cast %9 : vector<8x5xf32> to vector<8x5x1xf32>
    %11 = math.log %10 : vector<8x5x1xf32>
    %12 = arith.addf %5, %11 : vector<8x5x1xf32>
    %13 = vector.extract_strided_slice %2 {offsets = [0, 0, 0], sizes = [8, 5, 1], strides = [1, 1, 1]} : vector<8x5x6xf32> to vector<8x5x1xf32>
    %14 = arith.subf %13, %12 : vector<8x5x1xf32>
    %cst_4 = arith.constant 5.000000e-02 : f32
    %15 = vector.broadcast %cst_4 : f32 to vector<8x5x1xf32>
    %16 = arith.subf %14, %15 : vector<8x5x1xf32>
    %c0_5 = arith.constant 0 : index
    %c0_6 = arith.constant 0 : index
    %c0_7 = arith.constant 0 : index
    %17 = vector.load %arg2[%c0_5, %c0_6, %c0_7] : memref<1x1x5xi32, #tpu.memory_space<vmem>>, vector<1x1x5xi32>
    %18 = vector.shape_cast %17 : vector<1x1x5xi32> to vector<1x5xi32>
    %19 = vector.shape_cast %18 : vector<1x5xi32> to vector<1x5x1xi32>
    %20 = tpu.iota {dimensions = array<i32: 2>} : vector<1x5x6xi32>
    %21 = vector.broadcast %19 : vector<1x5x1xi32> to vector<1x5x6xi32>
    %22 = arith.cmpi eq, %21, %20 : vector<1x5x6xi32>
    %cst_8 = arith.constant 0.000000e+00 : f32
    %23 = vector.shape_cast %22 : vector<1x5x6xi1> to vector<1x5x6xi1>
    %24 = vector.broadcast %23 : vector<1x5x6xi1> to vector<8x5x6xi1>
    %25 = vector.broadcast %cst_8 : f32 to vector<8x5x6xf32>
    %26 = arith.select %24, %2, %25 : vector<8x5x6xi1>, vector<8x5x6xf32>
    %cst_9 = arith.constant dense<0.000000e+00> : vector<8x5xf32>
    %27 = vector.multi_reduction <add>, %26, %cst_9 [2] : vector<8x5x6xf32> to vector<8x5xf32>
    %28 = vector.shape_cast %27 : vector<8x5xf32> to vector<8x5x1xf32>
    %29 = arith.subf %28, %12 : vector<8x5x1xf32>
    %cst_10 = arith.constant 5.000000e-02 : f32
    %30 = vector.broadcast %cst_10 : f32 to vector<8x5x1xf32>
    %31 = arith.subf %29, %30 : vector<8x5x1xf32>
    %cst_11 = arith.constant dense<0xFF800000> : vector<8x5xf32>
    %32 = vector.multi_reduction <maximumf>, %3, %cst_11 [2] : vector<8x5x4xf32> to vector<8x5xf32>
    %33 = vector.shape_cast %32 : vector<8x5xf32> to vector<8x5x1xf32>
    %34 = vector.broadcast %33 : vector<8x5x1xf32> to vector<8x5x4xf32>
    %35 = arith.subf %3, %34 : vector<8x5x4xf32>
    %36 = math.exp %35 : vector<8x5x4xf32>
    %cst_12 = arith.constant dense<0.000000e+00> : vector<8x5xf32>
    %37 = vector.multi_reduction <add>, %36, %cst_12 [2] : vector<8x5x4xf32> to vector<8x5xf32>
    %38 = vector.shape_cast %37 : vector<8x5xf32> to vector<8x5x1xf32>
    %39 = math.log %38 : vector<8x5x1xf32>
    %40 = arith.addf %33, %39 : vector<8x5x1xf32>
    %41 = vector.broadcast %40 : vector<8x5x1xf32> to vector<8x5x4xf32>
    %42 = arith.subf %3, %41 : vector<8x5x4xf32>
    %43 = vector.shape_cast %16 : vector<8x5x1xf32> to vector<8x5xf32>
    %c0_13 = arith.constant 0 : index
    %c0_14 = arith.constant 0 : index
    %c0_15 = arith.constant 0 : index
    %c0_16 = arith.constant 0 : index
    %44 = vector.load %arg4[%c0_13, %c0_14, %c0_15, %c0_16] : memref<1x6x8x5xf32, #tpu.memory_space<vmem>>, vector<1x1x8x5xf32>
    %45 = vector.shape_cast %44 : vector<1x1x8x5xf32> to vector<8x5xf32>
    %46 = vector.shape_cast %43 : vector<8x5xf32> to vector<1x1x8x5xf32>
    tpu.vector_store %arg4[%c0_13, %c0_14, %c0_15, %c0_16], %46 {strides = array<i32>} : memref<1x6x8x5xf32, #tpu.memory_space<vmem>>, vector<1x1x8x5xf32>,
    %47 = vector.shape_cast %31 : vector<8x5x1xf32> to vector<8x5xf32>
    %c0_17 = arith.constant 0 : index
    %c1 = arith.constant 1 : index
    %c0_18 = arith.constant 0 : index
    %c0_19 = arith.constant 0 : index
    %48 = vector.load %arg4[%c0_17, %c1, %c0_18, %c0_19] : memref<1x6x8x5xf32, #tpu.memory_space<vmem>>, vector<1x1x8x5xf32>
    %49 = vector.shape_cast %48 : vector<1x1x8x5xf32> to vector<8x5xf32>
    %50 = vector.shape_cast %47 : vector<8x5xf32> to vector<1x1x8x5xf32>
    tpu.vector_store %arg4[%c0_17, %c1, %c0_18, %c0_19], %50 {strides = array<i32>} : memref<1x6x8x5xf32, #tpu.memory_space<vmem>>, vector<1x1x8x5xf32>,
    %51 = vector.extract_strided_slice %42 {offsets = [0, 0, 0], sizes = [8, 5, 1], strides = [1, 1, 1]} : vector<8x5x4xf32> to vector<8x5x1xf32>
    %52 = vector.shape_cast %51 : vector<8x5x1xf32> to vector<8x5xf32>
    %c0_20 = arith.constant 0 : index
    %c2 = arith.constant 2 : index
    %c0_21 = arith.constant 0 : index
    %c0_22 = arith.constant 0 : index
    %53 = vector.load %arg4[%c0_20, %c2, %c0_21, %c0_22] : memref<1x6x8x5xf32, #tpu.memory_space<vmem>>, vector<1x1x8x5xf32>
    %54 = vector.shape_cast %53 : vector<1x1x8x5xf32> to vector<8x5xf32>
    %55 = vector.shape_cast %52 : vector<8x5xf32> to vector<1x1x8x5xf32>
    tpu.vector_store %arg4[%c0_20, %c2, %c0_21, %c0_22], %55 {strides = array<i32>} : memref<1x6x8x5xf32, #tpu.memory_space<vmem>>, vector<1x1x8x5xf32>,
    %56 = vector.extract_strided_slice %42 {offsets = [0, 0, 1], sizes = [8, 5, 1], strides = [1, 1, 1]} : vector<8x5x4xf32> to vector<8x5x1xf32>
    %57 = vector.shape_cast %56 : vector<8x5x1xf32> to vector<8x5xf32>
    %c0_23 = arith.constant 0 : index
    %c3 = arith.constant 3 : index
    %c0_24 = arith.constant 0 : index
    %c0_25 = arith.constant 0 : index
    %58 = vector.load %arg4[%c0_23, %c3, %c0_24, %c0_25] : memref<1x6x8x5xf32, #tpu.memory_space<vmem>>, vector<1x1x8x5xf32>
    %59 = vector.shape_cast %58 : vector<1x1x8x5xf32> to vector<8x5xf32>
    %60 = vector.shape_cast %57 : vector<8x5xf32> to vector<1x1x8x5xf32>
    tpu.vector_store %arg4[%c0_23, %c3, %c0_24, %c0_25], %60 {strides = array<i32>} : memref<1x6x8x5xf32, #tpu.memory_space<vmem>>, vector<1x1x8x5xf32>,
    %61 = vector.extract_strided_slice %42 {offsets = [0, 0, 2], sizes = [8, 5, 1], strides = [1, 1, 1]} : vector<8x5x4xf32> to vector<8x5x1xf32>
    %62 = vector.shape_cast %61 : vector<8x5x1xf32> to vector<8x5xf32>
    %c0_26 = arith.constant 0 : index
    %c4 = arith.constant 4 : index
    %c0_27 = arith.constant 0 : index
    %c0_28 = arith.constant 0 : index
    %63 = vector.load %arg4[%c0_26, %c4, %c0_27, %c0_28] : memref<1x6x8x5xf32, #tpu.memory_space<vmem>>, vector<1x1x8x5xf32>
    %64 = vector.shape_cast %63 : vector<1x1x8x5xf32> to vector<8x5xf32>
    %65 = vector.shape_cast %62 : vector<8x5xf32> to vector<1x1x8x5xf32>
    tpu.vector_store %arg4[%c0_26, %c4, %c0_27, %c0_28], %65 {strides = array<i32>} : memref<1x6x8x5xf32, #tpu.memory_space<vmem>>, vector<1x1x8x5xf32>,
    %66 = vector.extract_strided_slice %42 {offsets = [0, 0, 3], sizes = [8, 5, 1], strides = [1, 1, 1]} : vector<8x5x4xf32> to vector<8x5x1xf32>
    %67 = vector.shape_cast %66 : vector<8x5x1xf32> to vector<8x5xf32>
    %c0_29 = arith.constant 0 : index
    %c5 = arith.constant 5 : index
    %c0_30 = arith.constant 0 : index
    %c0_31 = arith.constant 0 : index
    %68 = vector.load %arg4[%c0_29, %c5, %c0_30, %c0_31] : memref<1x6x8x5xf32, #tpu.memory_space<vmem>>, vector<1x1x8x5xf32>
    %69 = vector.shape_cast %68 : vector<1x1x8x5xf32> to vector<8x5xf32>
    %70 = vector.shape_cast %67 : vector<8x5xf32> to vector<1x1x8x5xf32>
    tpu.vector_store %arg4[%c0_29, %c5, %c0_30, %c0_31], %70 {strides = array<i32>} : memref<1x6x8x5xf32, #tpu.memory_space<vmem>>, vector<1x1x8x5xf32>,
    return
  }
  func.func @transform_0(%arg0: i32, %arg1: i32) -> (i32, i32, i32) {
    %c0_i32 = arith.constant 0 : i32
    %c0_i32_0 = arith.constant 0 : i32
    %c0_i32_1 = arith.constant 0 : i32
    return %arg0, %c0_i32, %c0_i32_0 : i32, i32, i32
  }
  func.func @transform_1(%arg0: i32, %arg1: i32) -> (i32, i32, i32, i32) {
    %c0_i32 = arith.constant 0 : i32
    %c0_i32_0 = arith.constant 0 : i32
    %c0_i32_1 = arith.constant 0 : i32
    return %arg0, %arg1, %c0_i32, %c0_i32_0 : i32, i32, i32, i32
  }
  func.func @transform_2(%arg0: i32, %arg1: i32) -> (i32, i32, i32, i32) {
    %c0_i32 = arith.constant 0 : i32
    %c0_i32_0 = arith.constant 0 : i32
    %c0_i32_1 = arith.constant 0 : i32
    return %arg0, %c0_i32, %arg1, %c0_i32_0 : i32, i32, i32, i32
  }
}

</mosaic_0001>

<llo_original>
// kernel: tpu_custom_call.1
$region0: #{tpu_custom_call.1}
  #allocation0 [shape = 'u32[]', space=smem, size = 0x4, offset = 0x4, fixed_abs, tag = 'smem constant byte address 0x4 - core index']
  #allocation1 [shape = 'u32[72,128]{1,0:T(1,128)}', space=vmem, size = 0x9000, scoped, tag = 'internal scratch']
  %s0 = inlined_call_operand.vmem [shape: s32[2,1,5], index: 0, kind: input, shape index: {}]
  %s1 = inlined_call_operand.vmem [shape: f32[2,8,5,10], index: 1, kind: input, shape index: {}]
  %s2 = inlined_call_operand.vmem [shape: f32[2,6,8,5], index: 2, kind: output, shape index: {}]
  %s3 = sld [smem:[#allocation0]]
  $region41: #{tpu_custom_call.1} parent=0
    _
  %s5 = ssub.s32 1, %s3
  %s6 = scalar_select 0, %s5, %s3
  loop: start=0, step=1, limit=4
  $region2: #{tpu_custom_call.1} parent=0 // loop_pre_header
    _
  $region3: #{tpu_custom_call.1} parent=0 // loop_header
    %s8 = sphi 0, %s12
    %p9 = scmp.ge.s32.totalorder %s8, 4
    %s15 = sphi 0, %s27
    %s16 = sphi 0, %s23
    %s17 = sphi 0, %s15
    %s18 = sphi 0, %s16
    %s19 = sphi 0, %s17
    %s20 = sphi 0, %s18
    %s30 = sphi 0, %s32
    %s33 = sphi 0, %s30
    %s34 = sphi 0, %s33
    %s50 = sphi 0, %s34
    %s58 = sphi 0, %s60
    %s61 = sphi 0, %s58
    %s62 = sphi 0, %s61
    %s78 = sphi 0, %s62
    %s86 = sphi 0, %s88
    %s89 = sphi 0, %s86
    %s90 = sphi 0, %s89
    %s106 = sphi 0, %s90
  $region4: #{tpu_custom_call.1} parent=0 // loop_header_branch
    %11 = sbr.rel (%p9) target = $region8
  $region5: #{tpu_custom_call.1} parent=0 // loop_body
    %s13 = ssub.s32 %s8, 1
    %s14 = ssub.s32 %s8, 2
    %s21 = sadd.s32 1, %s16
    %p22 = scmp.ge.s32.totalorder %s21, 1
    %s23 = scalar_select %p22, 0, %s21
    %s24 = sadd.s32 1, %s15
    %s25 = scalar_select %p22, %s24, %s15
    %p26 = scmp.ge.s32.totalorder %s25, 2
    %s27 = scalar_select %p26, 0, %s25
    %s28 = ssub.s32 %s15, %s27
    %p29 = scmp.eq.s32.totalorder %s28, 0
    %s31 = sadd.s32 %s30, 1
    %s32 = scalar_select %p29, %s30, %s31
    %p35 = pneg %p29
    %p36 = scmp.eq.s32.totalorder %s8, 1
    %p37 = por %p35, %p36
    %p38 = scmp.ne.s32.totalorder %s30, %s33
    %p39 = scmp.eq.s32.totalorder %s8, 0
    %p40 = por %p38, %p39
    %p41 = scmp.ne.s32.totalorder %s30, %s33
    %p42 = scmp.eq.s32.totalorder %s13, 1
    %p43 = por %p41, %p42
    %p44 = scmp.ne.s32.totalorder %s33, %s34
    %p45 = scmp.eq.s32.totalorder %s13, 0
    %p46 = por %p44, %p45
    %p47 = scmp.ne.s32.totalorder %s33, %s34
    %p48 = scmp.eq.s32.totalorder %s14, 1
    %p49 = por %p47, %p48
    %p51 = scmp.ne.s32.totalorder %s34, %s50
    %p52 = scmp.eq.s32.totalorder %s14, 0
    %p53 = por %p51, %p52
    %s54 = ssub.s32 %s15, %s27
    %s55 = ssub.s32 %s16, %s23
    %s56 = sor.u32 %s54, %s55
    %p57 = scmp.eq.s32.totalorder %s56, 0
    %s59 = sadd.s32 %s58, 1
    %s60 = scalar_select %p57, %s58, %s59
    %p63 = pneg %p57
    %p64 = scmp.eq.s32.totalorder %s8, 1
    %p65 = por %p63, %p64
    %p66 = scmp.ne.s32.totalorder %s58, %s61
    %p67 = scmp.eq.s32.totalorder %s8, 0
    %p68 = por %p66, %p67
    %p69 = scmp.ne.s32.totalorder %s58, %s61
    %p70 = scmp.eq.s32.totalorder %s13, 1
    %p71 = por %p69, %p70
    %p72 = scmp.ne.s32.totalorder %s61, %s62
    %p73 = scmp.eq.s32.totalorder %s13, 0
    %p74 = por %p72, %p73
    %p75 = scmp.ne.s32.totalorder %s61, %s62
    %p76 = scmp.eq.s32.totalorder %s14, 1
    %p77 = por %p75, %p76
    %p79 = scmp.ne.s32.totalorder %s62, %s78
    %p80 = scmp.eq.s32.totalorder %s14, 0
    %p81 = por %p79, %p80
    %s82 = ssub.s32 %s15, %s27
    %s83 = ssub.s32 %s16, %s23
    %s84 = sor.u32 %s82, %s83
    %p85 = scmp.eq.s32.totalorder %s84, 0
    %s87 = sadd.s32 %s86, 1
    %s88 = scalar_select %p85, %s86, %s87
    %p91 = pneg %p85
    %p92 = scmp.eq.s32.totalorder %s8, 1
    %p93 = por %p91, %p92
    %p94 = scmp.ne.s32.totalorder %s86, %s89
    %p95 = scmp.eq.s32.totalorder %s8, 0
    %p96 = por %p94, %p95
    %p97 = scmp.ne.s32.totalorder %s86, %s89
    %p98 = scmp.eq.s32.totalorder %s13, 1
    %p99 = por %p97, %p98
    %p100 = scmp.ne.s32.totalorder %s89, %s90
    %p101 = scmp.eq.s32.totalorder %s13, 0
    %p102 = por %p100, %p101
    %p103 = scmp.ne.s32.totalorder %s89, %s90
    %p104 = scmp.eq.s32.totalorder %s14, 1
    %p105 = por %p103, %p104
    %p107 = scmp.ne.s32.totalorder %s90, %s106
    %p108 = scmp.eq.s32.totalorder %s14, 0
    %p109 = por %p107, %p108
    %p110 = scmp.le.s32.totalorder 1, %s8
    %p111 = scmp.lt.s32.totalorder %s8, 3
    %p112 = pnand %p110, %p111
    %p113 = pneg %p112
    // Predicated region
    $region9: #{tpu_custom_call.1} parent=5 // pred_check
      _
    $region10: #{tpu_custom_call.1} parent=5 // pred_check_branch
      %115 = sbr.rel (%p112) target = $region12
    $region11: #{tpu_custom_call.1} parent=5 // pred_region
      %s116 = ssub.s32 %s8, 1
    $region12: #{tpu_custom_call.1} parent=5 // pred_fallthru
      _
    %p117 = scmp.lt.s32.totalorder %s8, 2
    // Predicated region
    $region13: #{tpu_custom_call.1} parent=5 // pred_check
      %p118 = pneg %p117
    $region14: #{tpu_custom_call.1} parent=5 // pred_check_branch
      %120 = sbr.rel (%p118) target = $region16
    $region15: #{tpu_custom_call.1} parent=5 // pred_region
      // Predicated region
      $region17: #{tpu_custom_call.1} parent=15 // pred_check
        %p121 = pneg %p40
      $region18: #{tpu_custom_call.1} parent=15 // pred_check_branch
        %123 = sbr.rel (%p121) target = $region20
      $region19: #{tpu_custom_call.1} parent=15 // pred_region
        %p124 = scmp.lt.s32.totalorder %s15, 1
        %s125 = scalar_select %p124, %s15, 1
        %s126 = scalar_lea.vmem %s0, %s125
      $region20: #{tpu_custom_call.1} parent=15 // pred_fallthru
        _
      // Predicated region
      $region21: #{tpu_custom_call.1} parent=15 // pred_check
        %p127 = pneg %p68
      $region22: #{tpu_custom_call.1} parent=15 // pred_check_branch
        %129 = sbr.rel (%p127) target = $region24
      $region23: #{tpu_custom_call.1} parent=15 // pred_region
        %s130 = smul.u32 8, %s16
        %p131 = scmp.lt.s32.totalorder %s15, 1
        %s132 = scalar_select %p131, %s15, 1
        %p133 = scmp.lt.s32.totalorder %s130, 7
        %s134 = scalar_select %p133, %s130, 7
        %s135 = smul.addr %s132, 8
        %s136 = sadd.s32 %s134, %s135
        %s137 = smul.addr %s136, 8
        %s138 = scalar_lea.vmem %s1, %s137
        %s139 = smul.u32 8, %s16
      $region24: #{tpu_custom_call.1} parent=15 // pred_fallthru
        _
    $region16: #{tpu_custom_call.1} parent=5 // pred_fallthru
      _
    %p140 = scmp.le.s32.totalorder 1, %s8
    %p141 = scmp.lt.s32.totalorder %s8, 3
    %p142 = pnand %p140, %p141
    %p143 = pneg %p142
    // Predicated region
    $region25: #{tpu_custom_call.1} parent=5 // pred_check
      _
    $region26: #{tpu_custom_call.1} parent=5 // pred_check_branch
      %145 = sbr.rel (%p142) target = $region28
    $region27: #{tpu_custom_call.1} parent=5 // pred_region
      %s146 = ssub.s32 %s8, 1
      %p147 = scmp.lt.s32.totalorder %s17, 1
      %s148 = scalar_select %p147, %s17, 1
      %s149 = scalar_lea.vmem %s0, %s148
      %p150 = pneg %p46
      %p151 = pneg %p43
      %s152 = smul.u32 8, %s18
      %p153 = scmp.lt.s32.totalorder %s17, 1
      %s154 = scalar_select %p153, %s17, 1
      %p155 = scmp.lt.s32.totalorder %s152, 7
      %s156 = scalar_select %p155, %s152, 7
      %s157 = smul.addr %s154, 8
      %s158 = sadd.s32 %s156, %s157
      %s159 = smul.addr %s158, 8
      %s160 = scalar_lea.vmem %s1, %s159
      %p161 = pneg %p74
      %p162 = pneg %p71
      %p163 = pneg %p102
      %p164 = pneg %p99
      %p165 = scmp.lt.s32.totalorder %s17, 1
      %s166 = scalar_select %p165, %s17, 1
      %p167 = scmp.lt.s32.totalorder %s18, 0
      %s168 = scalar_select %p167, %s18, 0
      %s169 = smul.addr %s166, 6
      %s170 = sadd.s32 %s168, %s169
      %s171 = smul.addr %s170, 8
      %s172 = scalar_lea.vmem %s2, %s171
      %p173 = scmp.lt.s32.totalorder %s17, 1
      %s174 = scalar_select %p173, %s17, 1
      %s175 = scalar_lea.vmem %s0, %s174
      %s176 = smul.u32 8, %s18
      %p177 = scmp.lt.s32.totalorder %s17, 1
      %s178 = scalar_select %p177, %s17, 1
      %p179 = scmp.lt.s32.totalorder %s176, 7
      %s180 = scalar_select %p179, %s176, 7
      %s181 = smul.addr %s178, 8
      %s182 = sadd.s32 %s180, %s181
      %s183 = smul.addr %s182, 8
      %s184 = scalar_lea.vmem %s1, %s183
      %s185 = smul.u32 8, %s18
      %p186 = scmp.lt.s32.totalorder %s17, 1
      %s187 = scalar_select %p186, %s17, 1
      %p188 = scmp.lt.s32.totalorder %s18, 0
      %s189 = scalar_select %p188, %s18, 0
      %s190 = smul.addr %s187, 6
      %s191 = sadd.s32 %s189, %s190
      %s192 = smul.addr %s191, 8
      %s193 = scalar_lea.vmem %s2, %s192
      %v194 = vld [vmem:[%s184] sm:$0x1f]
      %v195 = vld [vmem:[%s184 + $0x8] sm:$0x1f]
      %v196 = vld [vmem:[%s184 + $0x10] sm:$0x1f]
      %v197 = vld [vmem:[%s184 + $0x18] sm:$0x1f]
      %v198 = vld [vmem:[%s184 + $0x20] sm:$0x1f]
      %v199 = vld [vmem:[%s184 + $0x28] sm:$0x1f]
      %v200 = vld [vmem:[%s184 + $0x30] sm:$0x1f]
      %v201 = vld [vmem:[%s184 + $0x38] sm:$0x1f]
      %vm202 = vcmask 45056
      %v203 = vsel %vm202, %v194, -inf
      %204 = vmax.xlane.f32.xlu0 %v203
      %v205 = vpop.xlane.xlu0 %204
      %v206 = vsel %vm202, %v195, -inf
      %207 = vmax.xlane.f32.xlu0 %v206
      %v208 = vpop.xlane.xlu0 %207
      %v209 = vsel %vm202, %v196, -inf
      %210 = vmax.xlane.f32.xlu0 %v209
      %v211 = vpop.xlane.xlu0 %210
      %v212 = vsel %vm202, %v197, -inf
      %213 = vmax.xlane.f32.xlu0 %v212
      %v214 = vpop.xlane.xlu0 %213
      %v215 = vsel %vm202, %v198, -inf
      %216 = vmax.xlane.f32.xlu0 %v215
      %v217 = vpop.xlane.xlu0 %216
      %v218 = vsel %vm202, %v199, -inf
      %219 = vmax.xlane.f32.xlu0 %v218
      %v220 = vpop.xlane.xlu0 %219
      %v221 = vsel %vm202, %v200, -inf
      %222 = vmax.xlane.f32.xlu0 %v221
      %v223 = vpop.xlane.xlu0 %222
      %v224 = vsel %vm202, %v201, -inf
      %225 = vmax.xlane.f32.xlu0 %v224
      %v226 = vpop.xlane.xlu0 %225
      %v227 = vsub.f32 %v194, %v205
      %v228 = vsub.f32 %v195, %v208
      %v229 = vsub.f32 %v196, %v211
      %v230 = vsub.f32 %v197, %v214
      %v231 = vsub.f32 %v198, %v217
      %v232 = vsub.f32 %v199, %v220
      %v233 = vsub.f32 %v200, %v223
      %v234 = vsub.f32 %v201, %v226
      %v235 = vmul.f32 %v227, 1.442695
      %v236 = vpow.pop %v235
      %v237 = vmul.f32 %v228, 1.442695
      %v238 = vpow.pop %v237
      %v239 = vmul.f32 %v229, 1.442695
      %v240 = vpow.pop %v239
      %v241 = vmul.f32 %v230, 1.442695
      %v242 = vpow.pop %v241
      %v243 = vmul.f32 %v231, 1.442695
      %v244 = vpow.pop %v243
      %v245 = vmul.f32 %v232, 1.442695
      %v246 = vpow.pop %v245
      %v247 = vmul.f32 %v233, 1.442695
      %v248 = vpow.pop %v247
      %v249 = vmul.f32 %v234, 1.442695
      %v250 = vpow.pop %v249
      %v251 = vsel %vm202, %v236, 0.0
      %252 = vadd.xlane.f32.xlu0 %v251
      %v253 = vpop.xlane.xlu0 %252
      %v254 = vsel %vm202, %v238, 0.0
      %255 = vadd.xlane.f32.xlu0 %v254
      %v256 = vpop.xlane.xlu0 %255
      %v257 = vsel %vm202, %v240, 0.0
      %258 = vadd.xlane.f32.xlu0 %v257
      %v259 = vpop.xlane.xlu0 %258
      %v260 = vsel %vm202, %v242, 0.0
      %261 = vadd.xlane.f32.xlu0 %v260
      %v262 = vpop.xlane.xlu0 %261
      %v263 = vsel %vm202, %v244, 0.0
      %264 = vadd.xlane.f32.xlu0 %v263
      %v265 = vpop.xlane.xlu0 %264
      %v266 = vsel %vm202, %v246, 0.0
      %267 = vadd.xlane.f32.xlu0 %v266
      %v268 = vpop.xlane.xlu0 %267
      %v269 = vsel %vm202, %v248, 0.0
      %270 = vadd.xlane.f32.xlu0 %v269
      %v271 = vpop.xlane.xlu0 %270
      %v272 = vsel %vm202, %v250, 0.0
      %273 = vadd.xlane.f32.xlu0 %v272
      %v274 = vpop.xlane.xlu0 %273
      %v275 = vlog2.pop %v253
      %v276 = vmul.f32 %v275, 0.6931472
      %v277 = vlog2.pop %v256
      %v278 = vmul.f32 %v277, 0.6931472
      %v279 = vlog2.pop %v259
      %v280 = vmul.f32 %v279, 0.6931472
      %v281 = vlog2.pop %v262
      %v282 = vmul.f32 %v281, 0.6931472
      %v283 = vlog2.pop %v265
      %v284 = vmul.f32 %v283, 0.6931472
      %v285 = vlog2.pop %v268
      %v286 = vmul.f32 %v285, 0.6931472
      %v287 = vlog2.pop %v271
      %v288 = vmul.f32 %v287, 0.6931472
      %v289 = vlog2.pop %v274
      %v290 = vmul.f32 %v289, 0.6931472
      %v291 = vadd.f32 %v205, %v276
      %v292 = vadd.f32 %v208, %v278
      %v293 = vadd.f32 %v211, %v280
      %v294 = vadd.f32 %v214, %v282
      %v295 = vadd.f32 %v217, %v284
      %v296 = vadd.f32 %v220, %v286
      %v297 = vadd.f32 %v223, %v288
      %v298 = vadd.f32 %v226, %v290
      %v299 = vsub.f32 %v194, %v291
      %v300 = vsub.f32 %v195, %v292
      %v301 = vsub.f32 %v196, %v293
      %v302 = vsub.f32 %v197, %v294
      %v303 = vsub.f32 %v198, %v295
      %v304 = vsub.f32 %v199, %v296
      %v305 = vsub.f32 %v200, %v297
      %v306 = vsub.f32 %v201, %v298
      %v307 = vsub.f32 %v299, 0.05
      %v308 = vsub.f32 %v300, 0.05
      %v309 = vsub.f32 %v301, 0.05
      %v310 = vsub.f32 %v302, 0.05
      %v311 = vsub.f32 %v303, 0.05
      %v312 = vsub.f32 %v304, 0.05
      %v313 = vsub.f32 %v305, 0.05
      %v314 = vsub.f32 %v306, 0.05
      %v315 = vld [vmem:[%s175] sm:$0x1]
      %v316 = vperm.slane %v315, 0
      %v317 = vlaneseq
      %v318 = vshrl.u32 %v317, 7
      %320 = vset.pattern.permute.xlu0 %v318
      %321 = vperm.xlu0 %320, %v316
      %v322 = vpop.permute.xlu0 %321
      %v323 = vlaneseq
      %v324 = vand.u32 %v323, 127
      %vm325 = vcmp.eq.s32.totalorder %v322, %v324
      %v326 = vsel %vm325, 1, 0
      %vm327 = vcmp.eq.s32.totalorder %v326, 1
      %v328 = vsel %vm327, %v194, 0.0
      %v329 = vsel %vm327, %v195, 0.0
      %v330 = vsel %vm327, %v196, 0.0
      %v331 = vsel %vm327, %v197, 0.0
      %v332 = vsel %vm327, %v198, 0.0
      %v333 = vsel %vm327, %v199, 0.0
      %v334 = vsel %vm327, %v200, 0.0
      %v335 = vsel %vm327, %v201, 0.0
      %v336 = vsel %vm202, %v328, 0.0
      %337 = vadd.xlane.f32.xlu0 %v336
      %v338 = vpop.xlane.xlu0 %337
      %v339 = vsel %vm202, %v329, 0.0
      %340 = vadd.xlane.f32.xlu0 %v339
      %v341 = vpop.xlane.xlu0 %340
      %v342 = vsel %vm202, %v330, 0.0
      %343 = vadd.xlane.f32.xlu0 %v342
      %v344 = vpop.xlane.xlu0 %343
      %v345 = vsel %vm202, %v331, 0.0
      %346 = vadd.xlane.f32.xlu0 %v345
      %v347 = vpop.xlane.xlu0 %346
      %v348 = vsel %vm202, %v332, 0.0
      %349 = vadd.xlane.f32.xlu0 %v348
      %v350 = vpop.xlane.xlu0 %349
      %v351 = vsel %vm202, %v333, 0.0
      %352 = vadd.xlane.f32.xlu0 %v351
      %v353 = vpop.xlane.xlu0 %352
      %v354 = vsel %vm202, %v334, 0.0
      %355 = vadd.xlane.f32.xlu0 %v354
      %v356 = vpop.xlane.xlu0 %355
      %v357 = vsel %vm202, %v335, 0.0
      %358 = vadd.xlane.f32.xlu0 %v357
      %v359 = vpop.xlane.xlu0 %358
      %v360 = vsub.f32 %v338, %v291
      %v361 = vsub.f32 %v341, %v292
      %v362 = vsub.f32 %v344, %v293
      %v363 = vsub.f32 %v347, %v294
      %v364 = vsub.f32 %v350, %v295
      %v365 = vsub.f32 %v353, %v296
      %v366 = vsub.f32 %v356, %v297
      %v367 = vsub.f32 %v359, %v298
      %v368 = vsub.f32 %v360, 0.05
      %v369 = vsub.f32 %v361, 0.05
      %v370 = vsub.f32 %v362, 0.05
      %v371 = vsub.f32 %v363, 0.05
      %v372 = vsub.f32 %v364, 0.05
      %v373 = vsub.f32 %v365, 0.05
      %v374 = vsub.f32 %v366, 0.05
      %v375 = vsub.f32 %v367, 0.05
      %vm376 = vcmask 77872
      %v377 = vsel %vm376, %v194, -inf
      %378 = vmax.xlane.f32.xlu0 %v377
      %v379 = vpop.xlane.xlu0 %378
      %v380 = vsel %vm376, %v195, -inf
      %381 = vmax.xlane.f32.xlu0 %v380
      %v382 = vpop.xlane.xlu0 %381
      %v383 = vsel %vm376, %v196, -inf
      %384 = vmax.xlane.f32.xlu0 %v383
      %v385 = vpop.xlane.xlu0 %384
      %v386 = vsel %vm376, %v197, -inf
      %387 = vmax.xlane.f32.xlu0 %v386
      %v388 = vpop.xlane.xlu0 %387
      %v389 = vsel %vm376, %v198, -inf
      %390 = vmax.xlane.f32.xlu0 %v389
      %v391 = vpop.xlane.xlu0 %390
      %v392 = vsel %vm376, %v199, -inf
      %393 = vmax.xlane.f32.xlu0 %v392
      %v394 = vpop.xlane.xlu0 %393
      %v395 = vsel %vm376, %v200, -inf
      %396 = vmax.xlane.f32.xlu0 %v395
      %v397 = vpop.xlane.xlu0 %396
      %v398 = vsel %vm376, %v201, -inf
      %399 = vmax.xlane.f32.xlu0 %v398
      %v400 = vpop.xlane.xlu0 %399
      %v401 = vsub.f32 %v194, %v379
      %v402 = vsub.f32 %v195, %v382
      %v403 = vsub.f32 %v196, %v385
      %v404 = vsub.f32 %v197, %v388
      %v405 = vsub.f32 %v198, %v391
      %v406 = vsub.f32 %v199, %v394
      %v407 = vsub.f32 %v200, %v397
      %v408 = vsub.f32 %v201, %v400
      %v409 = vmul.f32 %v401, 1.442695
      %v410 = vpow.pop %v409
      %v411 = vmul.f32 %v402, 1.442695
      %v412 = vpow.pop %v411
      %v413 = vmul.f32 %v403, 1.442695
      %v414 = vpow.pop %v413
      %v415 = vmul.f32 %v404, 1.442695
      %v416 = vpow.pop %v415
      %v417 = vmul.f32 %v405, 1.442695
      %v418 = vpow.pop %v417
      %v419 = vmul.f32 %v406, 1.442695
      %v420 = vpow.pop %v419
      %v421 = vmul.f32 %v407, 1.442695
      %v422 = vpow.pop %v421
      %v423 = vmul.f32 %v408, 1.442695
      %v424 = vpow.pop %v423
      %433 = vrot.lane.b32.xlu0 %v410, 122
      %v434 = vpop.permute.xlu0 %433
      %435 = vrot.lane.b32.xlu0 %v412, 122
      %v436 = vpop.permute.xlu0 %435
      %437 = vrot.lane.b32.xlu0 %v414, 122
      %v438 = vpop.permute.xlu0 %437
      %439 = vrot.lane.b32.xlu0 %v416, 122
      %v440 = vpop.permute.xlu0 %439
      %441 = vrot.lane.b32.xlu0 %v418, 122
      %v442 = vpop.permute.xlu0 %441
      %443 = vrot.lane.b32.xlu0 %v420, 122
      %v444 = vpop.permute.xlu0 %443
      %445 = vrot.lane.b32.xlu0 %v422, 122
      %v446 = vpop.permute.xlu0 %445
      %447 = vrot.lane.b32.xlu0 %v424, 122
      %v448 = vpop.permute.xlu0 %447
      %vm457 = vcmask 28672
      %v458 = vsel %vm457, %v434, 0.0
      %459 = vadd.xlane.f32.xlu0 %v458
      %v460 = vpop.xlane.xlu0 %459
      %v461 = vsel %vm457, %v436, 0.0
      %462 = vadd.xlane.f32.xlu0 %v461
      %v463 = vpop.xlane.xlu0 %462
      %v464 = vsel %vm457, %v438, 0.0
      %465 = vadd.xlane.f32.xlu0 %v464
      %v466 = vpop.xlane.xlu0 %465
      %v467 = vsel %vm457, %v440, 0.0
      %468 = vadd.xlane.f32.xlu0 %v467
      %v469 = vpop.xlane.xlu0 %468
      %v470 = vsel %vm457, %v442, 0.0
      %471 = vadd.xlane.f32.xlu0 %v470
      %v472 = vpop.xlane.xlu0 %471
      %v473 = vsel %vm457, %v444, 0.0
      %474 = vadd.xlane.f32.xlu0 %v473
      %v475 = vpop.xlane.xlu0 %474
      %v476 = vsel %vm457, %v446, 0.0
      %477 = vadd.xlane.f32.xlu0 %v476
      %v478 = vpop.xlane.xlu0 %477
      %v479 = vsel %vm457, %v448, 0.0
      %480 = vadd.xlane.f32.xlu0 %v479
      %v481 = vpop.xlane.xlu0 %480
      %v482 = vlog2.pop %v460
      %v483 = vmul.f32 %v482, 0.6931472
      %v484 = vlog2.pop %v463
      %v485 = vmul.f32 %v484, 0.6931472
      %v486 = vlog2.pop %v466
      %v487 = vmul.f32 %v486, 0.6931472
      %v488 = vlog2.pop %v469
      %v489 = vmul.f32 %v488, 0.6931472
      %v490 = vlog2.pop %v472
      %v491 = vmul.f32 %v490, 0.6931472
      %v492 = vlog2.pop %v475
      %v493 = vmul.f32 %v492, 0.6931472
      %v494 = vlog2.pop %v478
      %v495 = vmul.f32 %v494, 0.6931472
      %v496 = vlog2.pop %v481
      %v497 = vmul.f32 %v496, 0.6931472
      %v498 = vadd.f32 %v379, %v483
      %v499 = vadd.f32 %v382, %v485
      %v500 = vadd.f32 %v385, %v487
      %v501 = vadd.f32 %v388, %v489
      %v502 = vadd.f32 %v391, %v491
      %v503 = vadd.f32 %v394, %v493
      %v504 = vadd.f32 %v397, %v495
      %v505 = vadd.f32 %v400, %v497
      %v506 = vsub.f32 %v194, %v498
      %v507 = vsub.f32 %v195, %v499
      %v508 = vsub.f32 %v196, %v500
      %v509 = vsub.f32 %v197, %v501
      %v510 = vsub.f32 %v198, %v502
      %v511 = vsub.f32 %v199, %v503
      %v512 = vsub.f32 %v200, %v504
      %v513 = vsub.f32 %v201, %v505
      %522 = vset.pattern.permute.xlu0 0
      %523 = vperm.xlu0 %522, %v307
      %v524 = vpop.permute.xlu0 %523
      %525 = vset.pattern.permute.xlu0 0
      %526 = vperm.xlu0 %525, %v308
      %v527 = vpop.permute.xlu0 %526
      %528 = vset.pattern.permute.xlu0 0
      %529 = vperm.xlu0 %528, %v309
      %v530 = vpop.permute.xlu0 %529
      %531 = vset.pattern.permute.xlu0 0
      %532 = vperm.xlu0 %531, %v310
      %v533 = vpop.permute.xlu0 %532
      %534 = vset.pattern.permute.xlu0 0
      %535 = vperm.xlu0 %534, %v311
      %v536 = vpop.permute.xlu0 %535
      %537 = vset.pattern.permute.xlu0 0
      %538 = vperm.xlu0 %537, %v312
      %v539 = vpop.permute.xlu0 %538
      %540 = vset.pattern.permute.xlu0 0
      %541 = vperm.xlu0 %540, %v313
      %v542 = vpop.permute.xlu0 %541
      %543 = vset.pattern.permute.xlu0 0
      %544 = vperm.xlu0 %543, %v314
      %v545 = vpop.permute.xlu0 %544
      %v546 = vperm.slane %v524, %v324
      %v547 = vperm.slane %v527, %v324
      %v548 = vperm.slane %v530, %v324
      %v549 = vperm.slane %v533, %v324
      %v550 = vperm.slane %v536, %v324
      %v551 = vperm.slane %v539, %v324
      %v552 = vperm.slane %v542, %v324
      %v553 = vperm.slane %v545, %v324
      %vm554 = vcmask 1041409
      %v555 = vsel %vm554, %v547, %v546
      %vm556 = vcmask 1042434
      %v557 = vsel %vm556, %v548, %v555
      %vm558 = vcmask 1043459
      %v559 = vsel %vm558, %v549, %v557
      %vm560 = vcmask 1044484
      %v561 = vsel %vm560, %v550, %v559
      %vm562 = vcmask 1045509
      %v563 = vsel %vm562, %v551, %v561
      %vm564 = vcmask 1046534
      %v565 = vsel %vm564, %v552, %v563
      %vm566 = vcmask 1047559
      %v567 = vsel %vm566, %v553, %v565
      %vm569 = vcmask 39936
      %570 = vst.msk [vmem:[%s193] sm:$0xff] %vm569, %v567
      %v579 = vperm.slane %v368, %v324
      %v580 = vperm.slane %v369, %v324
      %v581 = vperm.slane %v370, %v324
      %v582 = vperm.slane %v371, %v324
      %v583 = vperm.slane %v372, %v324
      %v584 = vperm.slane %v373, %v324
      %v585 = vperm.slane %v374, %v324
      %v586 = vperm.slane %v375, %v324
      %v587 = vsel %vm554, %v580, %v579
      %v588 = vsel %vm556, %v581, %v587
      %v589 = vsel %vm558, %v582, %v588
      %v590 = vsel %vm560, %v583, %v589
      %v591 = vsel %vm562, %v584, %v590
      %v592 = vsel %vm564, %v585, %v591
      %v593 = vsel %vm566, %v586, %v592
      %s595 = scalar_lea.vmem %s193, 8
      %596 = vst.msk [vmem:[%s595] sm:$0xff] %vm569, %v593
      %605 = vset.pattern.permute.xlu0 6
      %606 = vperm.xlu0 %605, %v506
      %v607 = vpop.permute.xlu0 %606
      %608 = vset.pattern.permute.xlu0 6
      %609 = vperm.xlu0 %608, %v507
      %v610 = vpop.permute.xlu0 %609
      %611 = vset.pattern.permute.xlu0 6
      %612 = vperm.xlu0 %611, %v508
      %v613 = vpop.permute.xlu0 %612
      %614 = vset.pattern.permute.xlu0 6
      %615 = vperm.xlu0 %614, %v509
      %v616 = vpop.permute.xlu0 %615
      %617 = vset.pattern.permute.xlu0 6
      %618 = vperm.xlu0 %617, %v510
      %v619 = vpop.permute.xlu0 %618
      %620 = vset.pattern.permute.xlu0 6
      %621 = vperm.xlu0 %620, %v511
      %v622 = vpop.permute.xlu0 %621
      %623 = vset.pattern.permute.xlu0 6
      %624 = vperm.xlu0 %623, %v512
      %v625 = vpop.permute.xlu0 %624
      %626 = vset.pattern.permute.xlu0 6
      %627 = vperm.xlu0 %626, %v513
      %v628 = vpop.permute.xlu0 %627
      %v629 = vperm.slane %v607, %v324
      %v630 = vperm.slane %v610, %v324
      %v631 = vperm.slane %v613, %v324
      %v632 = vperm.slane %v616, %v324
      %v633 = vperm.slane %v619, %v324
      %v634 = vperm.slane %v622, %v324
      %v635 = vperm.slane %v625, %v324
      %v636 = vperm.slane %v628, %v324
      %v637 = vsel %vm554, %v630, %v629
      %v638 = vsel %vm556, %v631, %v637
      %v639 = vsel %vm558, %v632, %v638
      %v640 = vsel %vm560, %v633, %v639
      %v641 = vsel %vm562, %v634, %v640
      %v642 = vsel %vm564, %v635, %v641
      %v643 = vsel %vm566, %v636, %v642
      %s645 = scalar_lea.vmem %s193, 16
      %646 = vst.msk [vmem:[%s645] sm:$0xff] %vm569, %v643
      %647 = vset.pattern.permute.xlu0 7
      %648 = vperm.xlu0 %647, %v506
      %v649 = vpop.permute.xlu0 %648
      %650 = vset.pattern.permute.xlu0 7
      %651 = vperm.xlu0 %650, %v507
      %v652 = vpop.permute.xlu0 %651
      %653 = vset.pattern.permute.xlu0 7
      %654 = vperm.xlu0 %653, %v508
      %v655 = vpop.permute.xlu0 %654
      %656 = vset.pattern.permute.xlu0 7
      %657 = vperm.xlu0 %656, %v509
      %v658 = vpop.permute.xlu0 %657
      %659 = vset.pattern.permute.xlu0 7
      %660 = vperm.xlu0 %659, %v510
      %v661 = vpop.permute.xlu0 %660
      %662 = vset.pattern.permute.xlu0 7
      %663 = vperm.xlu0 %662, %v511
      %v664 = vpop.permute.xlu0 %663
      %665 = vset.pattern.permute.xlu0 7
      %666 = vperm.xlu0 %665, %v512
      %v667 = vpop.permute.xlu0 %666
      %668 = vset.pattern.permute.xlu0 7
      %669 = vperm.xlu0 %668, %v513
      %v670 = vpop.permute.xlu0 %669
      %v671 = vperm.slane %v649, %v324
      %v672 = vperm.slane %v652, %v324
      %v673 = vperm.slane %v655, %v324
      %v674 = vperm.slane %v658, %v324
      %v675 = vperm.slane %v661, %v324
      %v676 = vperm.slane %v664, %v324
      %v677 = vperm.slane %v667, %v324
      %v678 = vperm.slane %v670, %v324
      %v679 = vsel %vm554, %v672, %v671
      %v680 = vsel %vm556, %v673, %v679
      %v681 = vsel %vm558, %v674, %v680
      %v682 = vsel %vm560, %v675, %v681
      %v683 = vsel %vm562, %v676, %v682
      %v684 = vsel %vm564, %v677, %v683
      %v685 = vsel %vm566, %v678, %v684
      %s687 = scalar_lea.vmem %s193, 24
      %688 = vst.msk [vmem:[%s687] sm:$0xff] %vm569, %v685
      %689 = vset.pattern.permute.xlu0 8
      %690 = vperm.xlu0 %689, %v506
      %v691 = vpop.permute.xlu0 %690
      %692 = vset.pattern.permute.xlu0 8
      %693 = vperm.xlu0 %692, %v507
      %v694 = vpop.permute.xlu0 %693
      %695 = vset.pattern.permute.xlu0 8
      %696 = vperm.xlu0 %695, %v508
      %v697 = vpop.permute.xlu0 %696
      %698 = vset.pattern.permute.xlu0 8
      %699 = vperm.xlu0 %698, %v509
      %v700 = vpop.permute.xlu0 %699
      %701 = vset.pattern.permute.xlu0 8
      %702 = vperm.xlu0 %701, %v510
      %v703 = vpop.permute.xlu0 %702
      %704 = vset.pattern.permute.xlu0 8
      %705 = vperm.xlu0 %704, %v511
      %v706 = vpop.permute.xlu0 %705
      %707 = vset.pattern.permute.xlu0 8
      %708 = vperm.xlu0 %707, %v512
      %v709 = vpop.permute.xlu0 %708
      %710 = vset.pattern.permute.xlu0 8
      %711 = vperm.xlu0 %710, %v513
      %v712 = vpop.permute.xlu0 %711
      %v713 = vperm.slane %v691, %v324
      %v714 = vperm.slane %v694, %v324
      %v715 = vperm.slane %v697, %v324
      %v716 = vperm.slane %v700, %v324
      %v717 = vperm.slane %v703, %v324
      %v718 = vperm.slane %v706, %v324
      %v719 = vperm.slane %v709, %v324
      %v720 = vperm.slane %v712, %v324
      %v721 = vsel %vm554, %v714, %v713
      %v722 = vsel %vm556, %v715, %v721
      %v723 = vsel %vm558, %v716, %v722
      %v724 = vsel %vm560, %v717, %v723
      %v725 = vsel %vm562, %v718, %v724
      %v726 = vsel %vm564, %v719, %v725
      %v727 = vsel %vm566, %v720, %v726
      %s729 = scalar_lea.vmem %s193, 32
      %730 = vst.msk [vmem:[%s729] sm:$0xff] %vm569, %v727
      %731 = vset.pattern.permute.xlu0 9
      %732 = vperm.xlu0 %731, %v506
      %v733 = vpop.permute.xlu0 %732
      %734 = vset.pattern.permute.xlu0 9
      %735 = vperm.xlu0 %734, %v507
      %v736 = vpop.permute.xlu0 %735
      %737 = vset.pattern.permute.xlu0 9
      %738 = vperm.xlu0 %737, %v508
      %v739 = vpop.permute.xlu0 %738
      %740 = vset.pattern.permute.xlu0 9
      %741 = vperm.xlu0 %740, %v509
      %v742 = vpop.permute.xlu0 %741
      %743 = vset.pattern.permute.xlu0 9
      %744 = vperm.xlu0 %743, %v510
      %v745 = vpop.permute.xlu0 %744
      %746 = vset.pattern.permute.xlu0 9
      %747 = vperm.xlu0 %746, %v511
      %v748 = vpop.permute.xlu0 %747
      %749 = vset.pattern.permute.xlu0 9
      %750 = vperm.xlu0 %749, %v512
      %v751 = vpop.permute.xlu0 %750
      %752 = vset.pattern.permute.xlu0 9
      %753 = vperm.xlu0 %752, %v513
      %v754 = vpop.permute.xlu0 %753
      %v755 = vperm.slane %v733, %v324
      %v756 = vperm.slane %v736, %v324
      %v757 = vperm.slane %v739, %v324
      %v758 = vperm.slane %v742, %v324
      %v759 = vperm.slane %v745, %v324
      %v760 = vperm.slane %v748, %v324
      %v761 = vperm.slane %v751, %v324
      %v762 = vperm.slane %v754, %v324
      %v763 = vsel %vm554, %v756, %v755
      %v764 = vsel %vm556, %v757, %v763
      %v765 = vsel %vm558, %v758, %v764
      %v766 = vsel %vm560, %v759, %v765
      %v767 = vsel %vm562, %v760, %v766
      %v768 = vsel %vm564, %v761, %v767
      %v769 = vsel %vm566, %v762, %v768
      %s771 = scalar_lea.vmem %s193, 40
      %772 = vst.msk [vmem:[%s771] sm:$0xff] %vm569, %v769
      %p773 = scmp.lt.s32.totalorder %s17, 1
      %s774 = scalar_select %p773, %s17, 1
      %p775 = scmp.lt.s32.totalorder %s18, 0
      %s776 = scalar_select %p775, %s18, 0
      %s777 = smul.addr %s774, 6
      %s778 = sadd.s32 %s776, %s777
      %s779 = smul.addr %s778, 8
      %s780 = scalar_lea.vmem %s2, %s779
      // Predicated region
      $region29: #{tpu_custom_call.1} parent=27 // pred_check
        %p781 = pneg %p99
      $region30: #{tpu_custom_call.1} parent=27 // pred_check_branch
        %783 = sbr.rel (%p781) target = $region32
      $region31: #{tpu_custom_call.1} parent=27 // pred_region
        _
      $region32: #{tpu_custom_call.1} parent=27 // pred_fallthru
        _
    $region28: #{tpu_custom_call.1} parent=5 // pred_fallthru
      _
    %p784 = scmp.le.s32.totalorder 2, %s8
    // Predicated region
    $region33: #{tpu_custom_call.1} parent=5 // pred_check
      %p785 = pneg %p784
    $region34: #{tpu_custom_call.1} parent=5 // pred_check_branch
      %787 = sbr.rel (%p785) target = $region36
    $region35: #{tpu_custom_call.1} parent=5 // pred_region
      %s788 = ssub.s32 %s8, 2
      // Predicated region
      $region37: #{tpu_custom_call.1} parent=35 // pred_check
        %p789 = pneg %p105
      $region38: #{tpu_custom_call.1} parent=35 // pred_check_branch
        %791 = sbr.rel (%p789) target = $region40
      $region39: #{tpu_custom_call.1} parent=35 // pred_region
        %p792 = scmp.lt.s32.totalorder %s19, 1
        %s793 = scalar_select %p792, %s19, 1
        %p794 = scmp.lt.s32.totalorder %s20, 0
        %s795 = scalar_select %p794, %s20, 0
        %s796 = smul.addr %s793, 6
        %s797 = sadd.s32 %s795, %s796
        %s798 = smul.addr %s797, 8
        %s799 = scalar_lea.vmem %s2, %s798
      $region40: #{tpu_custom_call.1} parent=35 // pred_fallthru
        _
    $region36: #{tpu_custom_call.1} parent=5 // pred_fallthru
      _
  $region6: #{tpu_custom_call.1} parent=0 // loop_footer
    %s12 = sadd.s32 1, %s8
  $region7: #{tpu_custom_call.1} parent=0 // loop_footer_branch
    %7 = sbr.rel target = $region3
  $region8: #{tpu_custom_call.1} parent=0 // loop_exit
    _

</llo_original>
